<compile_context>
chip_gen: v5e
topology: v5e:2x2
jax: 0.10.0
libtpu: 0.0.40
codegen_flags: <defaults>
</compile_context>

<pallas_src>
import jax
import jax.numpy as jnp
from jax.experimental import pallas as pl
from jax.experimental.pallas import tpu as pltpu


# ----------------------------------------------------------------------------- #
# Fused kernel
# ----------------------------------------------------------------------------- #
def _make_parallel_block_kernel(oc, h2, h3):
    def kernel(x_ref, wA_ref, bA_ref, wB_ref, bB_ref, wC1_ref, wC23_ref, bC_ref, o_ref):
        x = x_ref[...]
        w_dtype = wA_ref.dtype

        # Stage A: one stacked MXU matmul for all three first layers (shared LHS x).
        hA = jnp.dot(x, wA_ref[...], preferred_element_type=jnp.float32)
        hA = jnp.maximum(hA + bA_ref[...], 0.0)          # folded BN + ReLU (f32 epilogue)
        p1 = hA[:, :oc]                                  # path1 output (stays in vregs)
        h23 = hA[:, oc:oc + h2 + h3]                     # path2 / path3 hidden activations

        # Stage B: block-diagonal weight -> [p2 | p3] in a single MXU pass.
        p23 = jnp.dot(h23.astype(w_dtype), wB_ref[...], preferred_element_type=jnp.float32)
        p23 = jnp.maximum(p23 + bB_ref[...], 0.0)

        # Stage C: combine via split-weight accumulation (replaces torch.cat + Linear).
        acc = jnp.dot(p1.astype(w_dtype), wC1_ref[...], preferred_element_type=jnp.float32)
        acc = acc + jnp.dot(p23.astype(w_dtype), wC23_ref[...], preferred_element_type=jnp.float32)
        out = jnp.maximum(acc + bC_ref[...], 0.0)

        # Dropout(0.2) is identity in eval mode.
        # TODO(synk): training-mode BN (batch stats) and dropout PRNG mask not implemented.
        o_ref[...] = out.astype(o_ref.dtype)

    return kernel


# ----------------------------------------------------------------------------- #
# Parameter init (PyTorch-equivalent defaults) and one-time prep (BN fold + stack)
# ----------------------------------------------------------------------------- #
def _linear_params(key, fan_in, fan_out):
    # PyTorch nn.Linear default init: U(-1/sqrt(fan_in), 1/sqrt(fan_in))
    kw, kb = jax.random.split(key)
    bound = 1.0 / (fan_in ** 0.5)
    w = jax.random.uniform(kw, (fan_out, fan_in), jnp.float32, -bound, bound)
    b = jax.random.uniform(kb, (fan_out,), jnp.float32, -bound, bound)
    return w, b


def _bn_params(fout):
    # PyTorch BatchNorm1d defaults: gamma=1, beta=0, running_mean=0, running_var=1
    return (jnp.ones((fout,), jnp.float32),
            jnp.zeros((fout,), jnp.float32),
            jnp.zeros((fout,), jnp.float32),
            jnp.ones((fout,), jnp.float32))


def init_parallel_block(key, in_channels, out_channels):
    keys = jax.random.split(key, 6)
    h2 = in_channels // 2
    h3 = in_channels // 4
    return {
        "path1": [(_linear_params(keys[0], in_channels, out_channels), _bn_params(out_channels))],
        "path2": [(_linear_params(keys[1], in_channels, h2), _bn_params(h2)),
                  (_linear_params(keys[2], h2, out_channels), _bn_params(out_channels))],
        "path3": [(_linear_params(keys[3], in_channels, h3), _bn_params(h3)),
                  (_linear_params(keys[4], h3, out_channels), _bn_params(out_channels))],
        "combine": [(_linear_params(keys[5], out_channels * 3, out_channels), _bn_params(out_channels))],
    }


def _fold_bn(w, b, gamma, beta, mean, var, eps=1e-5):
    """Fold eval-mode BatchNorm1d into the preceding Linear: W' = s*W, b' = s*(b-mean)+beta."""
    scale = gamma / jnp.sqrt(var + eps)
    return w * scale[:, None], scale * (b - mean) + beta


def prepare_params(raw, compute_dtype=jnp.float32, eps=1e-5):
    """One-time prep: fold BN, transpose, stack/block-diagonalize, lane-pad the output stage.

    compute_dtype=jnp.bfloat16 is recommended for the matmul operands on v6e/v7x at larger
    sizes (f32 accumulation is kept either way); biases stay f32 (epilogue on the VPU).
    """
    (w1, b1), bn1 = raw["path1"][0]
    (w2a, b2a), bn2a = raw["path2"][0]
    (w2b, b2b), bn2b = raw["path2"][1]
    (w3a, b3a), bn3a = raw["path3"][0]
    (w3b, b3b), bn3b = raw["path3"][1]
    (wc, bc), bnc = raw["combine"][0]

    w1f, b1f = _fold_bn(w1, b1, *bn1, eps=eps)
    w2af, b2af = _fold_bn(w2a, b2a, *bn2a, eps=eps)
    w2bf, b2bf = _fold_bn(w2b, b2b, *bn2b, eps=eps)
    w3af, b3af = _fold_bn(w3a, b3a, *bn3a, eps=eps)
    w3bf, b3bf = _fold_bn(w3b, b3b, *bn3b, eps=eps)
    wcf, bcf = _fold_bn(wc, bc, *bnc, eps=eps)

    oc = w1f.shape[0]
    fin = w1f.shape[1]
    h2 = w2af.shape[0]
    h3 = w3af.shape[0]

    # Stage A: stack the three first-layer weights (shared LHS x) -> one MXU pass.
    wA = jnp.concatenate([w1f.T, w2af.T, w3af.T], axis=1)          # [Fin, oc+h2+h3]
    bA = jnp.concatenate([b1f, b2af, b3af]).reshape(1, -1)         # [1, oc+h2+h3]

    # Stage B: block-diagonal second-layer weight (path2 & path3) -> one MXU pass.
    wB = jnp.zeros((h2 + h3, 2 * oc), jnp.float32)
    wB = wB.at[:h2, :oc].set(w2bf.T)
    wB = wB.at[h2:, oc:].set(w3bf.T)
    bB = jnp.concatenate([b2bf, b3bf]).reshape(1, -1)              # [1, 2*oc]

    # Stage C: combine weight split along its input dim (p1 | p2 | p3 order preserved),
    # zero-padded to a lane-dense output width (multiple of 128) for unmasked stores.
    out_pad = max(128, ((oc + 127) // 128) * 128)
    wcT = wcf.T                                                     # [3*oc, oc]
    wC1 = jnp.zeros((oc, out_pad), jnp.float32).at[:, :oc].set(wcT[:oc])
    wC23 = jnp.zeros((2 * oc, out_pad), jnp.float32).at[:, :oc].set(wcT[oc:])
    bC = jnp.zeros((1, out_pad), jnp.float32).at[0, :oc].set(bcf)

    return {
        "wA": wA.astype(compute_dtype), "bA": bA,
        "wB": wB.astype(compute_dtype), "bB": bB,
        "wC1": wC1.astype(compute_dtype), "wC23": wC23.astype(compute_dtype), "bC": bC,
        "dims": {"fin": int(fin), "oc": int(oc), "h2": int(h2), "h3": int(h3),
                 "out_pad": int(out_pad)},
        "compute_dtype": compute_dtype,
    }


# ----------------------------------------------------------------------------- #
# Forward: a single fused pallas_call
# ----------------------------------------------------------------------------- #
def parallel_block_forward(prep, x):
    d = prep["dims"]
    fin, oc, h2, h3, out_pad = d["fin"], d["oc"], d["h2"], d["h3"], d["out_pad"]
    B = x.shape[0]
    assert x.shape[1] == fin

    # Batch tile: whole batch when small; 8-aligned tiles (parallel grid) when large,
    # so the kernel pipelines x/out blocks while the weights stay VMEM-resident.
    bt = B
    for cand in (512, 256, 128, 64, 32, 16, 8):
        if B > cand and B % cand == 0:
            bt = cand
            break
    grid = (B // bt,)

    kernel = _make_parallel_block_kernel(oc, h2, h3)

    def resident(arr):
        nd = arr.ndim
        return pl.BlockSpec(arr.shape, lambda i, _nd=nd: (0,) * _nd)

    xc = x.astype(prep["compute_dtype"])

    out_padded = pl.pallas_call(
        kernel,
        out_shape=jax.ShapeDtypeStruct((B, out_pad), x.dtype),
        grid=grid,
        in_specs=[
            pl.BlockSpec((bt, fin), lambda i: (i, 0)),   # x: tiled over batch
            resident(prep["wA"]), resident(prep["bA"]),
            resident(prep["wB"]), resident(prep["bB"]),
            resident(prep["wC1"]), resident(prep["wC23"]), resident(prep["bC"]),
        ],
        out_specs=pl.BlockSpec((bt, out_pad), lambda i: (i, 0)),
        compiler_params=pltpu.CompilerParams(dimension_semantics=("parallel",)),
    )(xc, prep["wA"], prep["bA"], prep["wB"], prep["bB"],
      prep["wC1"], prep["wC23"], prep["bC"])

    return out_padded[:, :oc]


# ----------------------------------------------------------------------------- #
# Pure-JAX reference (unfused) for correctness checking
# ----------------------------------------------------------------------------- #
def _linear_bn_relu_ref(x, w, b, gamma, beta, rm, rv, eps=1e-5):
    y = x @ w.T + b
    y = (y - rm) / jnp.sqrt(rv + eps) * gamma + beta
    return jnp.maximum(y, 0.0)


def parallel_block_reference(raw, x):
    def run_path(h, stages):
        for (w, b), (g, bt_, rm, rv) in stages:
            h = _linear_bn_relu_ref(h, w, b, g, bt_, rm, rv)
        return h

    p1 = run_path(x, raw["path1"])
    p2 = run_path(x, raw["path2"])
    p3 = run_path(x, raw["path3"])
    combined = jnp.concatenate([p1, p2, p3], axis=1)
    return run_path(combined, raw["combine"])   # Dropout(0.2) identity in eval mode


# ----------------------------------------------------------------------------- #
if __name__ == "__main__":
    key = jax.random.PRNGKey(0)
    k_param, k_x = jax.random.split(key)

    batch = 8
    in_channels = 32
    out_channels = 16

    raw_params = init_parallel_block(k_param, in_channels, out_channels)
    prep = prepare_params(raw_params, compute_dtype=jnp.float32)
    x = jax.random.normal(k_x, (batch, in_channels), jnp.float32)

    out = parallel_block_forward(prep, x)
    out = jax.block_until_ready(out)

    ref = parallel_block_reference(raw_params, x)

    assert out.shape == (batch, out_channels), out.shape
    assert bool(jnp.all(out >= 0.0))                             # ReLU output
    assert bool(jnp.allclose(out, ref, rtol=1e-5, atol=1e-5))    # matches unfused reference
    print("KERNEL_OK")
</pallas_src>

<mosaic_0001>
module attributes {stable_mosaic.version = 11 : i64} {
  func.func @kernel(%arg0: i32, %arg1: memref<8x32xf32, #tpu.memory_space<vmem>>, %arg2: memref<32x40xf32, #tpu.memory_space<vmem>>, %arg3: memref<1x40xf32, #tpu.memory_space<vmem>>, %arg4: memref<24x32xf32, #tpu.memory_space<vmem>>, %arg5: memref<1x32xf32, #tpu.memory_space<vmem>>, %arg6: memref<16x128xf32, #tpu.memory_space<vmem>>, %arg7: memref<32x128xf32, #tpu.memory_space<vmem>>, %arg8: memref<1x128xf32, #tpu.memory_space<vmem>>, %arg9: memref<8x128xf32, #tpu.memory_space<vmem>>) attributes {dimension_semantics = [#tpu.dimension_semantics<parallel>], iteration_bounds = array<i64: 1>, scalar_prefetch = 0 : i64, scratch_operands = 0 : i64, tpu.core_type = #tpu.core_type<tc>, window_params = [{transform_indices = @transform_0, window_bounds = array<i64: 8, 32>}, {pipeline_mode = #tpu.pipeline_mode<synchronous>, transform_indices = @transform_1, window_bounds = array<i64: 32, 40>}, {pipeline_mode = #tpu.pipeline_mode<synchronous>, transform_indices = @transform_2, window_bounds = array<i64: 1, 40>}, {pipeline_mode = #tpu.pipeline_mode<synchronous>, transform_indices = @transform_3, window_bounds = array<i64: 24, 32>}, {pipeline_mode = #tpu.pipeline_mode<synchronous>, transform_indices = @transform_4, window_bounds = array<i64: 1, 32>}, {pipeline_mode = #tpu.pipeline_mode<synchronous>, transform_indices = @transform_5, window_bounds = array<i64: 16, 128>}, {pipeline_mode = #tpu.pipeline_mode<synchronous>, transform_indices = @transform_6, window_bounds = array<i64: 32, 128>}, {pipeline_mode = #tpu.pipeline_mode<synchronous>, transform_indices = @transform_7, window_bounds = array<i64: 1, 128>}, {transform_indices = @transform_8, window_bounds = array<i64: 8, 128>}]} {
    %c0 = arith.constant 0 : index
    %c0_0 = arith.constant 0 : index
    %0 = vector.load %arg1[%c0, %c0_0] : memref<8x32xf32, #tpu.memory_space<vmem>>, vector<8x32xf32>
    %c0_1 = arith.constant 0 : index
    %c0_2 = arith.constant 0 : index
    %1 = vector.load %arg2[%c0_1, %c0_2] : memref<32x40xf32, #tpu.memory_space<vmem>>, vector<32x40xf32>
    %cst = arith.constant dense<0.000000e+00> : vector<8x40xf32>
    %2 = tpu.matmul %0, %1, %cst {dimension_numbers = #tpu.dot_dimension_numbers<[1], [0], [0], [1], [0, 0, 1, 1], [], []>} : vector<8x32xf32>, vector<32x40xf32>, vector<8x40xf32> -> vector<8x40xf32>
    %c0_3 = arith.constant 0 : index
    %c0_4 = arith.constant 0 : index
    %3 = vector.load %arg3[%c0_3, %c0_4] : memref<1x40xf32, #tpu.memory_space<vmem>>, vector<1x40xf32>
    %4 = vector.broadcast %3 : vector<1x40xf32> to vector<8x40xf32>
    %5 = arith.addf %2, %4 : vector<8x40xf32>
    %cst_5 = arith.constant 0.000000e+00 : f32
    %6 = vector.broadcast %cst_5 : f32 to vector<8x40xf32>
    %7 = arith.maximumf %5, %6 : vector<8x40xf32>
    %8 = vector.extract_strided_slice %7 {offsets = [0, 0], sizes = [8, 16], strides = [1, 1]} : vector<8x40xf32> to vector<8x16xf32>
    %9 = vector.extract_strided_slice %7 {offsets = [0, 16], sizes = [8, 24], strides = [1, 1]} : vector<8x40xf32> to vector<8x24xf32>
    %c0_6 = arith.constant 0 : index
    %c0_7 = arith.constant 0 : index
    %10 = vector.load %arg4[%c0_6, %c0_7] : memref<24x32xf32, #tpu.memory_space<vmem>>, vector<24x32xf32>
    %cst_8 = arith.constant dense<0.000000e+00> : vector<8x32xf32>
    %11 = tpu.matmul %9, %10, %cst_8 {dimension_numbers = #tpu.dot_dimension_numbers<[1], [0], [0], [1], [0, 0, 1, 1], [], []>} : vector<8x24xf32>, vector<24x32xf32>, vector<8x32xf32> -> vector<8x32xf32>
    %c0_9 = arith.constant 0 : index
    %c0_10 = arith.constant 0 : index
    %12 = vector.load %arg5[%c0_9, %c0_10] : memref<1x32xf32, #tpu.memory_space<vmem>>, vector<1x32xf32>
    %13 = vector.broadcast %12 : vector<1x32xf32> to vector<8x32xf32>
    %14 = arith.addf %11, %13 : vector<8x32xf32>
    %cst_11 = arith.constant 0.000000e+00 : f32
    %15 = vector.broadcast %cst_11 : f32 to vector<8x32xf32>
    %16 = arith.maximumf %14, %15 : vector<8x32xf32>
    %c0_12 = arith.constant 0 : index
    %c0_13 = arith.constant 0 : index
    %17 = vector.load %arg6[%c0_12, %c0_13] : memref<16x128xf32, #tpu.memory_space<vmem>>, vector<16x128xf32>
    %cst_14 = arith.constant dense<0.000000e+00> : vector<8x128xf32>
    %18 = tpu.matmul %8, %17, %cst_14 {dimension_numbers = #tpu.dot_dimension_numbers<[1], [0], [0], [1], [0, 0, 1, 1], [], []>} : vector<8x16xf32>, vector<16x128xf32>, vector<8x128xf32> -> vector<8x128xf32>
    %c0_15 = arith.constant 0 : index
    %c0_16 = arith.constant 0 : index
    %19 = vector.load %arg7[%c0_15, %c0_16] : memref<32x128xf32, #tpu.memory_space<vmem>>, vector<32x128xf32>
    %cst_17 = arith.constant dense<0.000000e+00> : vector<8x128xf32>
    %20 = tpu.matmul %16, %19, %cst_17 {dimension_numbers = #tpu.dot_dimension_numbers<[1], [0], [0], [1], [0, 0, 1, 1], [], []>} : vector<8x32xf32>, vector<32x128xf32>, vector<8x128xf32> -> vector<8x128xf32>
    %21 = arith.addf %18, %20 : vector<8x128xf32>
    %c0_18 = arith.constant 0 : index
    %c0_19 = arith.constant 0 : index
    %22 = vector.load %arg8[%c0_18, %c0_19] : memref<1x128xf32, #tpu.memory_space<vmem>>, vector<1x128xf32>
    %23 = vector.broadcast %22 : vector<1x128xf32> to vector<8x128xf32>
    %24 = arith.addf %21, %23 : vector<8x128xf32>
    %cst_20 = arith.constant 0.000000e+00 : f32
    %25 = vector.broadcast %cst_20 : f32 to vector<8x128xf32>
    %26 = arith.maximumf %24, %25 : vector<8x128xf32>
    %c0_21 = arith.constant 0 : index
    %c0_22 = arith.constant 0 : index
    %27 = vector.load %arg9[%c0_21, %c0_22] : memref<8x128xf32, #tpu.memory_space<vmem>>, vector<8x128xf32>
    tpu.vector_store %arg9[%c0_21, %c0_22], %26 {strides = array<i32>} : memref<8x128xf32, #tpu.memory_space<vmem>>, vector<8x128xf32>,
    return
  }
  func.func @transform_0(%arg0: i32) -> (i32, i32) {
    %c0_i32 = arith.constant 0 : i32
    %c0_i32_0 = arith.constant 0 : i32
    return %arg0, %c0_i32 : i32, i32
  }
  func.func @transform_1(%arg0: i32) -> (i32, i32) {
    %c0_i32 = arith.constant 0 : i32
    %c0_i32_0 = arith.constant 0 : i32
    %c0_i32_1 = arith.constant 0 : i32
    return %c0_i32, %c0_i32_0 : i32, i32
  }
  func.func @transform_2(%arg0: i32) -> (i32, i32) {
    %c0_i32 = arith.constant 0 : i32
    %c0_i32_0 = arith.constant 0 : i32
    %c0_i32_1 = arith.constant 0 : i32
    return %c0_i32, %c0_i32_0 : i32, i32
  }
  func.func @transform_3(%arg0: i32) -> (i32, i32) {
    %c0_i32 = arith.constant 0 : i32
    %c0_i32_0 = arith.constant 0 : i32
    %c0_i32_1 = arith.constant 0 : i32
    return %c0_i32, %c0_i32_0 : i32, i32
  }
  func.func @transform_4(%arg0: i32) -> (i32, i32) {
    %c0_i32 = arith.constant 0 : i32
    %c0_i32_0 = arith.constant 0 : i32
    %c0_i32_1 = arith.constant 0 : i32
    return %c0_i32, %c0_i32_0 : i32, i32
  }
  func.func @transform_5(%arg0: i32) -> (i32, i32) {
    %c0_i32 = arith.constant 0 : i32
    %c0_i32_0 = arith.constant 0 : i32
    %c0_i32_1 = arith.constant 0 : i32
    return %c0_i32, %c0_i32_0 : i32, i32
  }
  func.func @transform_6(%arg0: i32) -> (i32, i32) {
    %c0_i32 = arith.constant 0 : i32
    %c0_i32_0 = arith.constant 0 : i32
    %c0_i32_1 = arith.constant 0 : i32
    return %c0_i32, %c0_i32_0 : i32, i32
  }
  func.func @transform_7(%arg0: i32) -> (i32, i32) {
    %c0_i32 = arith.constant 0 : i32
    %c0_i32_0 = arith.constant 0 : i32
    %c0_i32_1 = arith.constant 0 : i32
    return %c0_i32, %c0_i32_0 : i32, i32
  }
  func.func @transform_8(%arg0: i32) -> (i32, i32) {
    %c0_i32 = arith.constant 0 : i32
    %c0_i32_0 = arith.constant 0 : i32
    return %arg0, %c0_i32 : i32, i32
  }
}

</mosaic_0001>

<llo_original>
// kernel: tpu_custom_call.1
$region0: #{tpu_custom_call.1}
  #allocation0 [shape = 'u32[]', space=smem, size = 0x4, offset = 0x4, fixed_abs, tag = 'smem constant byte address 0x4 - core index']
  #allocation1 [shape = 'u32[72,128]{1,0:T(1,128)}', space=vmem, size = 0x9000, scoped, tag = 'internal scratch']
  %s0 = inlined_call_operand.hbm [shape: f32[8,32], index: 0, kind: input, shape index: {}]
  %s1 = inlined_call_operand.hbm [shape: f32[32,40], index: 1, kind: input, shape index: {}]
  %s2 = inlined_call_operand.vmem [shape: f32[1,40], index: 2, kind: input, shape index: {}]
  %s3 = inlined_call_operand.hbm [shape: f32[24,32], index: 3, kind: input, shape index: {}]
  %s4 = inlined_call_operand.vmem [shape: f32[1,32], index: 4, kind: input, shape index: {}]
  %s5 = inlined_call_operand.hbm [shape: f32[16,128], index: 5, kind: input, shape index: {}]
  %s6 = inlined_call_operand.hbm [shape: f32[32,128], index: 6, kind: input, shape index: {}]
  %s7 = inlined_call_operand.vmem [shape: f32[1,128], index: 7, kind: input, shape index: {}]
  %s8 = inlined_call_operand.hbm [shape: f32[8,128], index: 8, kind: output, shape index: {}]
  %s9 = sld [smem:[#allocation0]]
  $region62: #{tpu_custom_call.1} parent=0
    _
  %s11 = ssub.s32 1, %s9
  %s12 = scalar_select 0, %s11, %s9
  $region1: #{tpu_custom_call.1} parent=0
    #allocation2 [shape = 'u8[4096]{0}', space=vmem, size = 0x1000, scoped, tag = 'input window, operand 0, single buffered']
    #allocation3 [shape = 's32[1]{0}', space=sflag, size = 0x4, scoped, tag = 'scoped memory for tpu_custom_call.1']
    #allocation4 [shape = 's32[1]{0}', space=sflag, size = 0x4, scoped, tag = 'scoped memory for tpu_custom_call.1']
    #allocation5 [shape = 'u8[16384]{0}', space=vmem, size = 0x4000, scoped, tag = 'input window, operand 1, single buffered']
    #allocation6 [shape = 's32[1]{0}', space=sflag, size = 0x4, scoped, tag = 'scoped memory for tpu_custom_call.1']
    #allocation7 [shape = 'u8[12288]{0}', space=vmem, size = 0x3000, scoped, tag = 'input window, operand 3, single buffered']
    #allocation8 [shape = 'u8[8192]{0}', space=vmem, size = 0x2000, scoped, tag = 'input window, operand 5, single buffered']
    #allocation9 [shape = 's32[1]{0}', space=sflag, size = 0x4, scoped, tag = 'scoped memory for tpu_custom_call.1']
    #allocation10 [shape = 'u8[16384]{0}', space=vmem, size = 0x4000, scoped, tag = 'input window, operand 6, single buffered']
    #allocation11 [shape = 'u8[4096]{0}', space=vmem, size = 0x1000, scoped, tag = 'output window, operand 0, single buffered']
    %13 = vsyncpa [#allocation3], 0
    %14 = vsyncpa [#allocation6], 0
    %15 = vsyncpa [#allocation9], 0
    %16 = vsyncpa [#allocation4], 0
    // Predicated region
    $region2: #{tpu_custom_call.1} parent=1 // pred_check
      _
    $region3: #{tpu_custom_call.1} parent=1 // pred_check_branch
      %18 = sbr.rel (0) target = $region5
    $region4: #{tpu_custom_call.1} parent=1 // pred_region
      %20 = vsyncadd [#allocation3], 0
      %s22 = sshll.u32 %s0, 4
      %s23 = int_to_ptr.hbm [resolvable:$true] %s22
      %s24 = sshll.u32 [#allocation2], 4
      %s25 = int_to_ptr.vmem [resolvable:$true] %s24
      %27 = dma.hbm_to_vmem [thread:$0]  %s23, 128, %s25, [#allocation3]
    $region5: #{tpu_custom_call.1} parent=1 // pred_fallthru
      _
    // Predicated region
    $region6: #{tpu_custom_call.1} parent=1 // pred_check
      _
    $region7: #{tpu_custom_call.1} parent=1 // pred_check_branch
      %29 = sbr.rel (0) target = $region9
    $region8: #{tpu_custom_call.1} parent=1 // pred_region
      %31 = vsyncadd [#allocation6], 0
      %s32 = sshll.u32 %s1, 4
      %s33 = int_to_ptr.hbm [resolvable:$true] %s32
      %s34 = sshll.u32 [#allocation5], 4
      %s35 = int_to_ptr.vmem [resolvable:$true] %s34
      %40 = dma.hbm_to_vmem [thread:$0]  %s33, 512, %s35, [#allocation6], 128, 128, 8
    $region9: #{tpu_custom_call.1} parent=1 // pred_fallthru
      _
    // Predicated region
    $region10: #{tpu_custom_call.1} parent=1 // pred_check
      _
    $region11: #{tpu_custom_call.1} parent=1 // pred_check_branch
      %42 = sbr.rel (0) target = $region13
    $region12: #{tpu_custom_call.1} parent=1 // pred_region
      _
    $region13: #{tpu_custom_call.1} parent=1 // pred_fallthru
      _
    // Predicated region
    $region14: #{tpu_custom_call.1} parent=1 // pred_check
      _
    $region15: #{tpu_custom_call.1} parent=1 // pred_check_branch
      %44 = sbr.rel (0) target = $region17
    $region16: #{tpu_custom_call.1} parent=1 // pred_region
      %46 = vsyncadd [#allocation6], 0
      %s47 = sshll.u32 %s3, 4
      %s48 = int_to_ptr.hbm [resolvable:$true] %s47
      %s49 = sshll.u32 [#allocation7], 4
      %s50 = int_to_ptr.vmem [resolvable:$true] %s49
      %55 = dma.hbm_to_vmem [thread:$0]  %s48, 384, %s50, [#allocation6], 128, 128, 8
    $region17: #{tpu_custom_call.1} parent=1 // pred_fallthru
      _
    // Predicated region
    $region18: #{tpu_custom_call.1} parent=1 // pred_check
      _
    $region19: #{tpu_custom_call.1} parent=1 // pred_check_branch
      %57 = sbr.rel (0) target = $region21
    $region20: #{tpu_custom_call.1} parent=1 // pred_region
      _
    $region21: #{tpu_custom_call.1} parent=1 // pred_fallthru
      _
    // Predicated region
    $region22: #{tpu_custom_call.1} parent=1 // pred_check
      _
    $region23: #{tpu_custom_call.1} parent=1 // pred_check_branch
      %59 = sbr.rel (0) target = $region25
    $region24: #{tpu_custom_call.1} parent=1 // pred_region
      %61 = vsyncadd [#allocation9], 0
      %s62 = sshll.u32 %s5, 4
      %s63 = int_to_ptr.hbm [resolvable:$true] %s62
      %s64 = sshll.u32 [#allocation8], 4
      %s65 = int_to_ptr.vmem [resolvable:$true] %s64
      %70 = dma.hbm_to_vmem [thread:$0]  %s63, 256, %s65, [#allocation9], 128, 128, 8
    $region25: #{tpu_custom_call.1} parent=1 // pred_fallthru
      _
    // Predicated region
    $region26: #{tpu_custom_call.1} parent=1 // pred_check
      _
    $region27: #{tpu_custom_call.1} parent=1 // pred_check_branch
      %72 = sbr.rel (0) target = $region29
    $region28: #{tpu_custom_call.1} parent=1 // pred_region
      %74 = vsyncadd [#allocation9], 0
      %s75 = sshll.u32 %s6, 4
      %s76 = int_to_ptr.hbm [resolvable:$true] %s75
      %s77 = sshll.u32 [#allocation10], 4
      %s78 = int_to_ptr.vmem [resolvable:$true] %s77
      %83 = dma.hbm_to_vmem [thread:$0]  %s76, 512, %s78, [#allocation9], 128, 128, 8
    $region29: #{tpu_custom_call.1} parent=1 // pred_fallthru
      _
    // Predicated region
    $region30: #{tpu_custom_call.1} parent=1 // pred_check
      _
    $region31: #{tpu_custom_call.1} parent=1 // pred_check_branch
      %85 = sbr.rel (0) target = $region33
    $region32: #{tpu_custom_call.1} parent=1 // pred_region
      _
    $region33: #{tpu_custom_call.1} parent=1 // pred_fallthru
      _
    // Predicated region
    $region34: #{tpu_custom_call.1} parent=1 // pred_check
      _
    $region35: #{tpu_custom_call.1} parent=1 // pred_check_branch
      %87 = sbr.rel (0) target = $region37
    $region36: #{tpu_custom_call.1} parent=1 // pred_region
      %89 = dma.done [#allocation3], 128
    $region37: #{tpu_custom_call.1} parent=1 // pred_fallthru
      _
    // Predicated region
    $region38: #{tpu_custom_call.1} parent=1 // pred_check
      _
    $region39: #{tpu_custom_call.1} parent=1 // pred_check_branch
      %91 = sbr.rel (0) target = $region41
    $region40: #{tpu_custom_call.1} parent=1 // pred_region
      %93 = dma.done [#allocation6], 512
    $region41: #{tpu_custom_call.1} parent=1 // pred_fallthru
      _
    // Predicated region
    $region42: #{tpu_custom_call.1} parent=1 // pred_check
      _
    $region43: #{tpu_custom_call.1} parent=1 // pred_check_branch
      %95 = sbr.rel (0) target = $region45
    $region44: #{tpu_custom_call.1} parent=1 // pred_region
      %97 = dma.done [#allocation6], 384
    $region45: #{tpu_custom_call.1} parent=1 // pred_fallthru
      _
    // Predicated region
    $region46: #{tpu_custom_call.1} parent=1 // pred_check
      _
    $region47: #{tpu_custom_call.1} parent=1 // pred_check_branch
      %99 = sbr.rel (0) target = $region49
    $region48: #{tpu_custom_call.1} parent=1 // pred_region
      %101 = dma.done [#allocation9], 256
    $region49: #{tpu_custom_call.1} parent=1 // pred_fallthru
      _
    // Predicated region
    $region50: #{tpu_custom_call.1} parent=1 // pred_check
      _
    $region51: #{tpu_custom_call.1} parent=1 // pred_check_branch
      %103 = sbr.rel (0) target = $region53
    $region52: #{tpu_custom_call.1} parent=1 // pred_region
      %105 = dma.done [#allocation9], 512
    $region53: #{tpu_custom_call.1} parent=1 // pred_fallthru
      _
    %v106 = vld [vmem:[#allocation2] sm:$0xff]
    %v107 = vld [vmem:[#allocation5] sm:$0xff]
    %v108 = vld [vmem:[#allocation5 + $0x8] sm:$0xff]
    %v109 = vld [vmem:[#allocation5 + $0x10] sm:$0xff]
    %v110 = vld [vmem:[#allocation5 + $0x18] sm:$0xff]
    %v111 = vld [vmem:[%s2] sm:$0x1]
    %v113 = vperm.slane %v111, 0
    %vm115 = vcmask 261120
    %v117 = vsel %vm115, %v106, 0
    %119 = vmatpush.msra.mxu0 0.0
    %120 = vmatpush.msra.mxu0 0.0
    %121 = vmatpush.msra.mxu0 0.0
    %122 = vmatpush.msra.mxu0 0.0
    %123 = vmatpush.msra.mxu0 0.0
    %124 = vmatpush.msra.mxu0 0.0
    %125 = vmatpush.msra.mxu0 0.0
    %126 = vmatpush.msra.mxu0 0.0
    %127 = vmatpush.msra.mxu0 0.0
    %128 = vmatpush.msra.mxu0 0.0
    %129 = vmatpush.msra.mxu0 0.0
    %130 = vmatpush.msra.mxu0 0.0
    %131 = vmatpush.msra.mxu0 %v110
    %132 = vmatpush.msra.mxu0 %v109
    %133 = vmatpush.msra.mxu0 %v108
    %134 = vmatpush.msra.mxu0 %v107
    %135 = vmatmul.f32.gmra.mxu0 %v117
    %v136 = vpop.f32.mrf.mxu0
    %v137 = vadd.f32 %v113, %v136
    %138 = vdwg.mxu0
    %v139 = vmax.f32 %v137, 0.0
    %v140 = vld [vmem:[#allocation7] sm:$0xff]
    %v141 = vld [vmem:[#allocation7 + $0x8] sm:$0xff]
    %v142 = vld [vmem:[#allocation7 + $0x10] sm:$0xff]
    %v143 = vld [vmem:[%s4] sm:$0x1]
    %v145 = vperm.slane %v143, 0
    %148 = vrot.lane.b32.xlu0 %v139, 112
    %v149 = vpop.permute.xlu0 %148
    %vm150 = vcmask 195584
    %v151 = vsel %vm150, %v149, 0
    %153 = vmatpush.msra.mxu0 0.0
    %154 = vmatpush.msra.mxu0 0.0
    %155 = vmatpush.msra.mxu0 0.0
    %156 = vmatpush.msra.mxu0 0.0
    %157 = vmatpush.msra.mxu0 0.0
    %158 = vmatpush.msra.mxu0 0.0
    %159 = vmatpush.msra.mxu0 0.0
    %160 = vmatpush.msra.mxu0 0.0
    %161 = vmatpush.msra.mxu0 0.0
    %162 = vmatpush.msra.mxu0 0.0
    %163 = vmatpush.msra.mxu0 0.0
    %164 = vmatpush.msra.mxu0 0.0
    %165 = vmatpush.msra.mxu0 0.0
    %166 = vmatpush.msra.mxu0 %v142
    %167 = vmatpush.msra.mxu0 %v141
    %168 = vmatpush.msra.mxu0 %v140
    %169 = vmatmul.f32.gmra.mxu0 %v151
    %v170 = vpop.f32.mrf.mxu0
    %v171 = vadd.f32 %v145, %v170
    %172 = vdwg.mxu0
    %v173 = vmax.f32 %v171, 0.0
    %v174 = vld [vmem:[#allocation8] sm:$0xff]
    %v175 = vld [vmem:[#allocation8 + $0x8] sm:$0xff]
    %v176 = vld [vmem:[#allocation10] sm:$0xff]
    %v177 = vld [vmem:[#allocation10 + $0x8] sm:$0xff]
    %v178 = vld [vmem:[#allocation10 + $0x10] sm:$0xff]
    %v179 = vld [vmem:[#allocation10 + $0x18] sm:$0xff]
    %v181 = vsel %vm115, %v173, 0
    %183 = vmatpush.msra.mxu0 0.0
    %184 = vmatpush.msra.mxu0 0.0
    %185 = vmatpush.msra.mxu0 0.0
    %186 = vmatpush.msra.mxu0 0.0
    %187 = vmatpush.msra.mxu0 0.0
    %188 = vmatpush.msra.mxu0 0.0
    %189 = vmatpush.msra.mxu0 0.0
    %190 = vmatpush.msra.mxu0 0.0
    %191 = vmatpush.msra.mxu0 0.0
    %192 = vmatpush.msra.mxu0 0.0
    %193 = vmatpush.msra.mxu0 0.0
    %194 = vmatpush.msra.mxu0 0.0
    %195 = vmatpush.msra.mxu0 %v179
    %196 = vmatpush.msra.mxu0 %v178
    %197 = vmatpush.msra.mxu0 %v177
    %198 = vmatpush.msra.mxu0 %v176
    %199 = vmatmul.f32.gmra.mxu0 %v181
    %v200 = vpop.f32.mrf.mxu0
    %v201 = vadd.f32 0.0, %v200
    %202 = vdwg.mxu0
    %vm203 = vcmask 130048
    %v204 = vsel %vm203, %v139, 0
    %206 = vmatpush.msra.mxu0 0.0
    %207 = vmatpush.msra.mxu0 0.0
    %208 = vmatpush.msra.mxu0 0.0
    %209 = vmatpush.msra.mxu0 0.0
    %210 = vmatpush.msra.mxu0 0.0
    %211 = vmatpush.msra.mxu0 0.0
    %212 = vmatpush.msra.mxu0 0.0
    %213 = vmatpush.msra.mxu0 0.0
    %214 = vmatpush.msra.mxu0 0.0
    %215 = vmatpush.msra.mxu0 0.0
    %216 = vmatpush.msra.mxu0 0.0
    %217 = vmatpush.msra.mxu0 0.0
    %218 = vmatpush.msra.mxu0 0.0
    %219 = vmatpush.msra.mxu0 0.0
    %220 = vmatpush.msra.mxu0 %v175
    %221 = vmatpush.msra.mxu0 %v174
    %222 = vmatmul.f32.gmra.mxu0 %v204
    %v223 = vpop.f32.mrf.mxu0
    %v224 = vadd.f32 %v201, %v223
    %225 = vdwg.mxu0
    %v226 = vld [vmem:[%s7] sm:$0x1]
    %v228 = vperm.slane %v226, 0
    %v230 = vadd.f32 %v224, %v228
    %v231 = vmax.f32 %v230, 0.0
    %232 = vst [vmem:[#allocation11] sm:$0xff] %v231
    // Predicated region
    $region54: #{tpu_custom_call.1} parent=1 // pred_check
      _
    $region55: #{tpu_custom_call.1} parent=1 // pred_check_branch
      %234 = sbr.rel (0) target = $region57
    $region56: #{tpu_custom_call.1} parent=1 // pred_region
      %236 = vsyncadd [#allocation4], 0
      %s238 = sshll.u32 [#allocation11], 4
      %s239 = int_to_ptr.vmem [resolvable:$true] %s238
      %s240 = sshll.u32 %s8, 4
      %s241 = int_to_ptr.hbm [resolvable:$true] %s240
      %243 = dma.vmem_to_hbm [thread:$0]  %s239, 128, %s241, [#allocation4]
    $region57: #{tpu_custom_call.1} parent=1 // pred_fallthru
      _
    // Predicated region
    $region58: #{tpu_custom_call.1} parent=1 // pred_check
      _
    $region59: #{tpu_custom_call.1} parent=1 // pred_check_branch
      %245 = sbr.rel (0) target = $region61
    $region60: #{tpu_custom_call.1} parent=1 // pred_region
      %247 = dma.done [#allocation4], 128
    $region61: #{tpu_custom_call.1} parent=1 // pred_fallthru
      _
    %248 = vsyncpa [#allocation3], 1
    %249 = vsyncpa [#allocation6], 1
    %250 = vsyncpa [#allocation9], 1
    %251 = vsyncpa [#allocation4], 1

</llo_original>
